<compile_context>
chip_gen: v5e
topology: v5e:2x2
jax: 0.10.0
libtpu: 0.0.40
codegen_flags: <defaults>
</compile_context>

<pallas_src>
import math

import numpy as np

import jax
import jax.numpy as jnp
from jax.experimental import pallas as pl
from jax.experimental.pallas import tpu as pltpu


# ---------------------------------------------------------------------------
# Shape / tiling helpers
# ---------------------------------------------------------------------------
def _choose_fold(N, F, max_lanes=512):
    """Smallest fold s.t. (fold*F) % 128 == 0, fold | N, fold*F <= max_lanes; else 1."""
    if F % 128 == 0:
        return 1
    fold = 128 // math.gcd(F, 128)
    if fold * F <= max_lanes and N % fold == 0:
        return fold
    return 1


def _choose_tile_rows(rows, row_bytes, target_bytes=2 * 1024 * 1024, min_rows=512):
    """Row-tile size: ~2 MiB blocks, preferring an exact divisor (no edge blocks)."""
    target = max(8, (target_bytes // row_bytes) // 8 * 8)
    if rows <= target:
        return rows                       # single full-extent block (always legal)
    lo = min(min_rows, target)
    t = target
    while t >= lo:                        # prefer exact cover with a big tile
        if rows % t == 0:
            return t
        t -= 8
    return target                         # fixed tile + cdiv grid (edge block handled)


# ---------------------------------------------------------------------------
# Pass 1: per-lane batch statistics (sum, sum of squares) over the row axis.
# grid = (splits, tiles_per_split); the splits axis is "parallel" so both
# TensorCores produce partial sums on v7x; the inner axis accumulates.
# Overhanging / partial tiles are masked to zero by their *logical* row offset.
# ---------------------------------------------------------------------------
def _make_stats_kernel(*, rows, tile_rows, tiles_per_split, needs_mask):
    def kernel(x_ref, sum_ref, sumsq_ref):
        @pl.when(pl.program_id(1) == 0)
        def _():
            sum_ref[...] = jnp.zeros_like(sum_ref)
            sumsq_ref[...] = jnp.zeros_like(sumsq_ref)

        x = x_ref[...].astype(jnp.float32)                    # (tile_rows, L)
        if needs_mask:
            start = (pl.program_id(0) * tiles_per_split + pl.program_id(1)) * tile_rows
            valid = rows - start                              # <= 0 for clamped tiles
            ridx = jax.lax.broadcasted_iota(jnp.int32, (x.shape[0], 1), 0)
            x = jnp.where(ridx < valid, x, 0.0)

        sum_ref[...] += jnp.sum(x, axis=0, keepdims=True)[None]
        sumsq_ref[...] += jnp.sum(x * x, axis=0, keepdims=True)[None]

    return kernel


# ---------------------------------------------------------------------------
# Pass 2: streaming elementwise hot path (fully "parallel" grid).
# Per tile it first folds the raw statistics into per-lane scale/shift (a few
# one-vreg ops), then:
#   rb  = x * scale + shift
#   r   = sum over the cmplx group of x^2   (MXU matmul with a 0/1 matrix)
#   out = relu(rb) * rsqrt(max(r, eps)) * x
# ---------------------------------------------------------------------------
def _make_norm_kernel(*, eps, inv_n, feat, fold, cmplx, channels, use_mxu, use_rolls):
    def kernel(x_ref, sum_ref, sumsq_ref, gam_ref, bet_ref, *rest):
        if use_mxu:
            msum_ref, o_ref = rest
        else:
            (o_ref,) = rest

        # ---- fold BN statistics into per-lane scale/shift (one-vreg ops) ----
        s = jnp.sum(sum_ref[...], axis=0, keepdims=True)       # (1, L) combine splits
        ss = jnp.sum(sumsq_ref[...], axis=0, keepdims=True)
        if fold > 1:
            # Sum over the full residue class {lane + k*F mod L}: direction-agnostic.
            s_tot, ss_tot = s, ss
            for k in range(1, fold):
                s_tot = s_tot + pltpu.roll(s, k * feat, 1)
                ss_tot = ss_tot + pltpu.roll(ss, k * feat, 1)
            s, ss = s_tot, ss_tot
        mean = s * inv_n
        # E[x^2]-mean^2 in f32 can cancel for large-mean inputs; clamp guards NaN.
        var = jnp.maximum(ss * inv_n - mean * mean, 0.0)        # biased variance
        inv_std = jax.lax.rsqrt(var + eps)
        scale = gam_ref[...] * inv_std
        shift = bet_ref[...] - mean * scale

        # ---- streaming hot path ----
        x = x_ref[...].astype(jnp.float32)                      # (tile_rows, L)
        rb = x * scale + shift                                   # (1, L) broadcasts
        y = x * x

        if use_mxu:
            # Group sum on the MXU; constant 0/1 matrix includes the diagonal.
            # (Drop to Precision.HIGH on v7x if the vex slot ever binds.)
            r = jnp.dot(y, msum_ref[...], preferred_element_type=jnp.float32,
                        precision=jax.lax.Precision.HIGHEST)
        elif use_rolls:
            # Fallback (very wide L): direction/wrap-agnostic roll + lane-id match.
            L = x.shape[1]
            lane = jax.lax.broadcasted_iota(jnp.int32, (1, L), 1)
            c_idx = (lane // channels) % cmplx
            r = y
            for k in range(1, cmplx):
                off = k * channels
                want_hi = jnp.where(c_idx + k < cmplx, lane + off, -1)
                want_lo = jnp.where(c_idx - k >= 0, lane - off, -1)
                other = L - off
                shifts = (off,) if other == off else (off, other)
                for sft in shifts:
                    y_s = pltpu.roll(y, sft, 1)
                    l_s = pltpu.roll(lane, sft, 1)
                    hit = (l_s == want_hi) | (l_s == want_lo)
                    r = r + jnp.where(hit, y_s, 0.0)
        else:
            r = y                                               # cmplx == 1

        inv_mag = jax.lax.rsqrt(jnp.maximum(r, eps))            # EUP rsqrt
        o_ref[...] = (jnp.maximum(rb, 0.0) * inv_mag * x).astype(o_ref.dtype)

    return kernel


def batch_norm_hnet(X, gamma, beta, *, eps=1e-4):
    """Forward pass of hnet_lite.BatchNorm (training mode, fnc=relu).

    X:     (bs, h, w, rotation_order, cmplx, channels)
    gamma: (rotation_order*cmplx*channels,)  BatchNorm1d weight
    beta:  (rotation_order*cmplx*channels,)  BatchNorm1d bias
    """
    bs, h, w, order, cmplx, channels = X.shape
    F = order * cmplx * channels
    N = bs * h * w
    gamma = jnp.asarray(gamma, jnp.float32)
    beta = jnp.asarray(beta, jnp.float32)
    assert gamma.shape == (F,) and beta.shape == (F,), (gamma.shape, beta.shape, F)

    # Lane-density fold: pack `fold` consecutive flattened rows into the lane axis
    # (free, contiguous reshape -- no transpose) so the last dim is a multiple of 128.
    fold = _choose_fold(N, F)
    L = fold * F
    rows = N // fold
    Xf = X.reshape(rows, L)

    tile_rows = _choose_tile_rows(rows, L * 4)
    n_tiles = pl.cdiv(rows, tile_rows)
    splits = 2 if n_tiles >= 2 else 1
    tiles_per_split = pl.cdiv(n_tiles, splits)
    covered = splits * tiles_per_split
    clamp = covered != n_tiles                        # one overhanging tile to clamp
    needs_mask = (rows != n_tiles * tile_rows) or clamp

    vmem_limit = 32 * 1024 * 1024                     # cap; actual footprint ~10 MiB

    # ---------------- Pass 1: batch statistics (partial sums per split) -------------
    def x1_map(s, i):
        idx = s * tiles_per_split + i
        if clamp:
            idx = jnp.minimum(idx, n_tiles - 1)       # never a fully-OOB block
        return (idx, 0)

    sums, sumsqs = pl.pallas_call(
        _make_stats_kernel(rows=rows, tile_rows=tile_rows,
                           tiles_per_split=tiles_per_split, needs_mask=needs_mask),
        out_shape=(jax.ShapeDtypeStruct((splits, 1, L), jnp.float32),
                   jax.ShapeDtypeStruct((splits, 1, L), jnp.float32)),
        grid=(splits, tiles_per_split),
        in_specs=[pl.BlockSpec((tile_rows, L), x1_map)],
        out_specs=(pl.BlockSpec((1, 1, L), lambda s, i: (s, 0, 0)),
                   pl.BlockSpec((1, 1, L), lambda s, i: (s, 0, 0))),
        compiler_params=pltpu.CompilerParams(
            dimension_semantics=("parallel", "arbitrary"),
            vmem_limit_bytes=vmem_limit),
    )(Xf)

    # Tiny parameter prep (not on the pass1->pass2 critical path); stats math is
    # done inside the pass-2 kernel.
    gamma_t = jnp.tile(gamma, fold).reshape(1, L)
    beta_t = jnp.tile(beta, fold).reshape(1, L)
    sums2 = sums.reshape(splits, L)                   # free reshapes
    sumsqs2 = sumsqs.reshape(splits, L)

    use_mxu = (cmplx > 1) and (L <= 512)
    use_rolls = (cmplx > 1) and not use_mxu

    args = [Xf, sums2, sumsqs2, gamma_t, beta_t]
    in_specs = [pl.BlockSpec((tile_rows, L), lambda i: (i, 0)),
                pl.BlockSpec((splits, L), lambda i: (0, 0)),
                pl.BlockSpec((splits, L), lambda i: (0, 0)),
                pl.BlockSpec((1, L), lambda i: (0, 0)),
                pl.BlockSpec((1, L), lambda i: (0, 0))]
    if use_mxu:
        lanes = np.arange(L)
        grp = lanes // (cmplx * channels)             # (replica, order) combined
        chn = lanes % channels
        m_np = ((grp[:, None] == grp[None, :]) &
                (chn[:, None] == chn[None, :])).astype(np.float32)
        args.append(jnp.asarray(m_np))
        in_specs.append(pl.BlockSpec((L, L), lambda i: (0, 0)))

    # ---------------- Pass 2: normalization + complex-magnitude gating --------------
    out = pl.pallas_call(
        _make_norm_kernel(eps=eps, inv_n=1.0 / N, feat=F, fold=fold,
                          cmplx=cmplx, channels=channels,
                          use_mxu=use_mxu, use_rolls=use_rolls),
        out_shape=jax.ShapeDtypeStruct((rows, L), X.dtype),
        grid=(n_tiles,),
        in_specs=in_specs,
        out_specs=pl.BlockSpec((tile_rows, L), lambda i: (i, 0)),
        input_output_aliases={0: 0},                  # write in place over Xf
        compiler_params=pltpu.CompilerParams(
            dimension_semantics=("parallel",),
            vmem_limit_bytes=vmem_limit),
    )(*args)

    return out.reshape(X.shape)                       # free reshape back (no transpose)


def _reference(X, gamma, beta, eps):
    """Pure-JAX reference matching the PyTorch module (training mode, relu)."""
    bs, h, w, order, C, ch = X.shape
    mag = jnp.sqrt(jnp.maximum(jnp.sum(X * X, axis=4, keepdims=True), eps))
    X2 = X.reshape(-1, order * C * ch)
    mean = jnp.mean(X2, axis=0)
    var = jnp.var(X2, axis=0)             # biased, as used for normalization
    Rb = (X2 - mean) / jnp.sqrt(var + eps) * gamma + beta
    Rb = Rb.reshape(X.shape)
    c = jax.nn.relu(Rb) / mag
    return c * X


if __name__ == "__main__":
    rotation_order, cmplx, channels = 2, 2, 8
    bs, h, w = 2, 8, 8
    eps = 1e-4

    key = jax.random.PRNGKey(0)
    kx, kg, kb = jax.random.split(key, 3)
    X = jax.random.normal(
        kx, (bs, h, w, rotation_order, cmplx, channels), jnp.float32)
    tn_out = rotation_order * cmplx * channels
    gamma = 1.0 + 0.1 * jax.random.normal(kg, (tn_out,), jnp.float32)
    beta = 0.1 * jax.random.normal(kb, (tn_out,), jnp.float32)

    # Reference first: X is donated (in-place pass-2 output) at the jit boundary.
    ref = _reference(X, gamma, beta, eps)
    x_shape, x_dtype = X.shape, X.dtype

    fwd = jax.jit(lambda x, g, b: batch_norm_hnet(x, g, b, eps=eps),
                  donate_argnums=(0,))
    out = jax.block_until_ready(fwd(X, gamma, beta))

    assert out.shape == x_shape and out.dtype == x_dtype
    max_err = float(jnp.max(jnp.abs(out - ref)))
    assert jnp.allclose(out, ref, atol=1e-4, rtol=1e-4), max_err

    print("KERNEL_OK")
</pallas_src>

<mosaic_0001>
module attributes {stable_mosaic.version = 11 : i64} {
  func.func @kernel(%arg0: i32, %arg1: i32, %arg2: memref<32x128xf32, #tpu.memory_space<vmem>>, %arg3: memref<1x1x128xf32, #tpu.memory_space<vmem>>, %arg4: memref<1x1x128xf32, #tpu.memory_space<vmem>>) attributes {dimension_semantics = [#tpu.dimension_semantics<parallel>, #tpu.dimension_semantics<arbitrary>], iteration_bounds = array<i64: 1, 1>, scalar_prefetch = 0 : i64, scratch_operands = 0 : i64, tpu.core_type = #tpu.core_type<tc>, window_params = [{transform_indices = @transform_0, window_bounds = array<i64: 32, 128>}, {transform_indices = @transform_1, window_bounds = array<i64: 1, 1, 128>}, {transform_indices = @transform_2, window_bounds = array<i64: 1, 1, 128>}]} {
    %c0_i32 = arith.constant 0 : i32
    %0 = arith.cmpi eq, %arg1, %c0_i32 : i32
    %1 = arith.extui %0 : i1 to i32
    %c0_i32_0 = arith.constant 0 : i32
    %2 = arith.cmpi ne, %1, %c0_i32_0 : i32
    scf.if %2 {
      %cst_15 = arith.constant 0.000000e+00 : f32
      %17 = vector.broadcast %cst_15 : f32 to vector<1x1x128xf32>
      %c0_16 = arith.constant 0 : index
      %c0_17 = arith.constant 0 : index
      %c0_18 = arith.constant 0 : index
      %18 = vector.load %arg3[%c0_16, %c0_17, %c0_18] : memref<1x1x128xf32, #tpu.memory_space<vmem>>, vector<1x1x128xf32>
      tpu.vector_store %arg3[%c0_16, %c0_17, %c0_18], %17 {strides = array<i32>} : memref<1x1x128xf32, #tpu.memory_space<vmem>>, vector<1x1x128xf32>,
      %cst_19 = arith.constant 0.000000e+00 : f32
      %19 = vector.broadcast %cst_19 : f32 to vector<1x1x128xf32>
      %c0_20 = arith.constant 0 : index
      %c0_21 = arith.constant 0 : index
      %c0_22 = arith.constant 0 : index
      %20 = vector.load %arg4[%c0_20, %c0_21, %c0_22] : memref<1x1x128xf32, #tpu.memory_space<vmem>>, vector<1x1x128xf32>
      tpu.vector_store %arg4[%c0_20, %c0_21, %c0_22], %19 {strides = array<i32>} : memref<1x1x128xf32, #tpu.memory_space<vmem>>, vector<1x1x128xf32>,
    } else {
    }
    %c0 = arith.constant 0 : index
    %c0_1 = arith.constant 0 : index
    %3 = vector.load %arg2[%c0, %c0_1] : memref<32x128xf32, #tpu.memory_space<vmem>>, vector<32x128xf32>
    %c0_2 = arith.constant 0 : index
    %c0_3 = arith.constant 0 : index
    %c0_4 = arith.constant 0 : index
    %4 = vector.load %arg3[%c0_2, %c0_3, %c0_4] : memref<1x1x128xf32, #tpu.memory_space<vmem>>, vector<1x1x128xf32>
    %cst = arith.constant dense<0.000000e+00> : vector<128xf32>
    %5 = vector.multi_reduction <add>, %3, %cst [0] : vector<32x128xf32> to vector<128xf32>
    %6 = vector.shape_cast %5 : vector<128xf32> to vector<1x128xf32>
    %7 = vector.shape_cast %6 : vector<1x128xf32> to vector<1x1x128xf32>
    %8 = arith.addf %4, %7 : vector<1x1x128xf32>
    %c0_5 = arith.constant 0 : index
    %c0_6 = arith.constant 0 : index
    %c0_7 = arith.constant 0 : index
    %9 = vector.load %arg3[%c0_5, %c0_6, %c0_7] : memref<1x1x128xf32, #tpu.memory_space<vmem>>, vector<1x1x128xf32>
    tpu.vector_store %arg3[%c0_5, %c0_6, %c0_7], %8 {strides = array<i32>} : memref<1x1x128xf32, #tpu.memory_space<vmem>>, vector<1x1x128xf32>,
    %c0_8 = arith.constant 0 : index
    %c0_9 = arith.constant 0 : index
    %c0_10 = arith.constant 0 : index
    %10 = vector.load %arg4[%c0_8, %c0_9, %c0_10] : memref<1x1x128xf32, #tpu.memory_space<vmem>>, vector<1x1x128xf32>
    %11 = arith.mulf %3, %3 : vector<32x128xf32>
    %cst_11 = arith.constant dense<0.000000e+00> : vector<128xf32>
    %12 = vector.multi_reduction <add>, %11, %cst_11 [0] : vector<32x128xf32> to vector<128xf32>
    %13 = vector.shape_cast %12 : vector<128xf32> to vector<1x128xf32>
    %14 = vector.shape_cast %13 : vector<1x128xf32> to vector<1x1x128xf32>
    %15 = arith.addf %10, %14 : vector<1x1x128xf32>
    %c0_12 = arith.constant 0 : index
    %c0_13 = arith.constant 0 : index
    %c0_14 = arith.constant 0 : index
    %16 = vector.load %arg4[%c0_12, %c0_13, %c0_14] : memref<1x1x128xf32, #tpu.memory_space<vmem>>, vector<1x1x128xf32>
    tpu.vector_store %arg4[%c0_12, %c0_13, %c0_14], %15 {strides = array<i32>} : memref<1x1x128xf32, #tpu.memory_space<vmem>>, vector<1x1x128xf32>,
    return
  }
  func.func @transform_0(%arg0: i32, %arg1: i32) -> (i32, i32) {
    %c1_i32 = arith.constant 1 : i32
    %0 = arith.muli %arg0, %c1_i32 : i32
    %1 = arith.addi %0, %arg1 : i32
    %c0_i32 = arith.constant 0 : i32
    %c0_i32_0 = arith.constant 0 : i32
    return %1, %c0_i32 : i32, i32
  }
  func.func @transform_1(%arg0: i32, %arg1: i32) -> (i32, i32, i32) {
    %c0_i32 = arith.constant 0 : i32
    %c0_i32_0 = arith.constant 0 : i32
    %c0_i32_1 = arith.constant 0 : i32
    return %arg0, %c0_i32, %c0_i32_0 : i32, i32, i32
  }
  func.func @transform_2(%arg0: i32, %arg1: i32) -> (i32, i32, i32) {
    %c0_i32 = arith.constant 0 : i32
    %c0_i32_0 = arith.constant 0 : i32
    %c0_i32_1 = arith.constant 0 : i32
    return %arg0, %c0_i32, %c0_i32_0 : i32, i32, i32
  }
}

module attributes {stable_mosaic.version = 11 : i64} {
  func.func @kernel(%arg0: i32, %arg1: memref<32x128xf32, #tpu.memory_space<vmem>>, %arg2: memref<1x128xf32, #tpu.memory_space<vmem>>, %arg3: memref<1x128xf32, #tpu.memory_space<vmem>>, %arg4: memref<1x128xf32, #tpu.memory_space<vmem>>, %arg5: memref<1x128xf32, #tpu.memory_space<vmem>>, %arg6: memref<128x128xf32, #tpu.memory_space<vmem>>, %arg7: memref<32x128xf32, #tpu.memory_space<vmem>>) attributes {dimension_semantics = [#tpu.dimension_semantics<parallel>], iteration_bounds = array<i64: 1>, scalar_prefetch = 0 : i64, scratch_operands = 0 : i64, tpu.core_type = #tpu.core_type<tc>, window_params = [{transform_indices = @transform_0, window_bounds = array<i64: 32, 128>}, {pipeline_mode = #tpu.pipeline_mode<synchronous>, transform_indices = @transform_1, window_bounds = array<i64: 1, 128>}, {pipeline_mode = #tpu.pipeline_mode<synchronous>, transform_indices = @transform_2, window_bounds = array<i64: 1, 128>}, {pipeline_mode = #tpu.pipeline_mode<synchronous>, transform_indices = @transform_3, window_bounds = array<i64: 1, 128>}, {pipeline_mode = #tpu.pipeline_mode<synchronous>, transform_indices = @transform_4, window_bounds = array<i64: 1, 128>}, {pipeline_mode = #tpu.pipeline_mode<synchronous>, transform_indices = @transform_5, window_bounds = array<i64: 128, 128>}, {transform_indices = @transform_6, window_bounds = array<i64: 32, 128>}]} {
    %c0 = arith.constant 0 : index
    %c0_0 = arith.constant 0 : index
    %0 = vector.load %arg2[%c0, %c0_0] : memref<1x128xf32, #tpu.memory_space<vmem>>, vector<1x128xf32>
    %cst = arith.constant dense<0.000000e+00> : vector<128xf32>
    %1 = vector.multi_reduction <add>, %0, %cst [0] : vector<1x128xf32> to vector<128xf32>
    %2 = vector.shape_cast %1 : vector<128xf32> to vector<1x128xf32>
    %c0_1 = arith.constant 0 : index
    %c0_2 = arith.constant 0 : index
    %3 = vector.load %arg3[%c0_1, %c0_2] : memref<1x128xf32, #tpu.memory_space<vmem>>, vector<1x128xf32>
    %cst_3 = arith.constant dense<0.000000e+00> : vector<128xf32>
    %4 = vector.multi_reduction <add>, %3, %cst_3 [0] : vector<1x128xf32> to vector<128xf32>
    %5 = vector.shape_cast %4 : vector<128xf32> to vector<1x128xf32>
    %c32_i32 = arith.constant 32 : i32
    %6 = tpu.dynamic_rotate %2 by %c32_i32 dim 1 : vector<1x128xf32>, i32 -> vector<1x128xf32>
    %7 = arith.addf %2, %6 : vector<1x128xf32>
    %c32_i32_4 = arith.constant 32 : i32
    %8 = tpu.dynamic_rotate %5 by %c32_i32_4 dim 1 : vector<1x128xf32>, i32 -> vector<1x128xf32>
    %9 = arith.addf %5, %8 : vector<1x128xf32>
    %c64_i32 = arith.constant 64 : i32
    %10 = tpu.dynamic_rotate %2 by %c64_i32 dim 1 : vector<1x128xf32>, i32 -> vector<1x128xf32>
    %11 = arith.addf %7, %10 : vector<1x128xf32>
    %c64_i32_5 = arith.constant 64 : i32
    %12 = tpu.dynamic_rotate %5 by %c64_i32_5 dim 1 : vector<1x128xf32>, i32 -> vector<1x128xf32>
    %13 = arith.addf %9, %12 : vector<1x128xf32>
    %c96_i32 = arith.constant 96 : i32
    %14 = tpu.dynamic_rotate %2 by %c96_i32 dim 1 : vector<1x128xf32>, i32 -> vector<1x128xf32>
    %15 = arith.addf %11, %14 : vector<1x128xf32>
    %c96_i32_6 = arith.constant 96 : i32
    %16 = tpu.dynamic_rotate %5 by %c96_i32_6 dim 1 : vector<1x128xf32>, i32 -> vector<1x128xf32>
    %17 = arith.addf %13, %16 : vector<1x128xf32>
    %cst_7 = arith.constant 7.812500e-03 : f32
    %18 = vector.broadcast %cst_7 : f32 to vector<1x128xf32>
    %19 = arith.mulf %15, %18 : vector<1x128xf32>
    %cst_8 = arith.constant 7.812500e-03 : f32
    %20 = vector.broadcast %cst_8 : f32 to vector<1x128xf32>
    %21 = arith.mulf %17, %20 : vector<1x128xf32>
    %22 = arith.mulf %19, %19 : vector<1x128xf32>
    %23 = arith.subf %21, %22 : vector<1x128xf32>
    %cst_9 = arith.constant 0.000000e+00 : f32
    %24 = vector.broadcast %cst_9 : f32 to vector<1x128xf32>
    %25 = arith.maximumf %23, %24 : vector<1x128xf32>
    %cst_10 = arith.constant 9.99999974E-5 : f32
    %26 = vector.broadcast %cst_10 : f32 to vector<1x128xf32>
    %27 = arith.addf %25, %26 : vector<1x128xf32>
    %28 = math.rsqrt %27 : vector<1x128xf32>
    %c0_11 = arith.constant 0 : index
    %c0_12 = arith.constant 0 : index
    %29 = vector.load %arg4[%c0_11, %c0_12] : memref<1x128xf32, #tpu.memory_space<vmem>>, vector<1x128xf32>
    %30 = arith.mulf %29, %28 : vector<1x128xf32>
    %c0_13 = arith.constant 0 : index
    %c0_14 = arith.constant 0 : index
    %31 = vector.load %arg5[%c0_13, %c0_14] : memref<1x128xf32, #tpu.memory_space<vmem>>, vector<1x128xf32>
    %32 = arith.mulf %19, %30 : vector<1x128xf32>
    %33 = arith.subf %31, %32 : vector<1x128xf32>
    %c0_15 = arith.constant 0 : index
    %c0_16 = arith.constant 0 : index
    %34 = vector.load %arg1[%c0_15, %c0_16] : memref<32x128xf32, #tpu.memory_space<vmem>>, vector<32x128xf32>
    %35 = vector.broadcast %30 : vector<1x128xf32> to vector<32x128xf32>
    %36 = arith.mulf %34, %35 : vector<32x128xf32>
    %37 = vector.broadcast %33 : vector<1x128xf32> to vector<32x128xf32>
    %38 = arith.addf %36, %37 : vector<32x128xf32>
    %39 = arith.mulf %34, %34 : vector<32x128xf32>
    %c0_17 = arith.constant 0 : index
    %c0_18 = arith.constant 0 : index
    %40 = vector.load %arg6[%c0_17, %c0_18] : memref<128x128xf32, #tpu.memory_space<vmem>>, vector<128x128xf32>
    %cst_19 = arith.constant dense<0.000000e+00> : vector<32x128xf32>
    %41 = tpu.matmul %39, %40, %cst_19 {dimension_numbers = #tpu.dot_dimension_numbers<[1], [0], [0], [1], [0, 0, 1, 1], [], []>, precision = #tpu.contract_precision<fp32>} : vector<32x128xf32>, vector<128x128xf32>, vector<32x128xf32> -> vector<32x128xf32>
    %cst_20 = arith.constant 9.99999974E-5 : f32
    %42 = vector.broadcast %cst_20 : f32 to vector<32x128xf32>
    %43 = arith.maximumf %41, %42 : vector<32x128xf32>
    %44 = math.rsqrt %43 : vector<32x128xf32>
    %cst_21 = arith.constant 0.000000e+00 : f32
    %45 = vector.broadcast %cst_21 : f32 to vector<32x128xf32>
    %46 = arith.maximumf %38, %45 : vector<32x128xf32>
    %47 = arith.mulf %46, %44 : vector<32x128xf32>
    %48 = arith.mulf %47, %34 : vector<32x128xf32>
    %c0_22 = arith.constant 0 : index
    %c0_23 = arith.constant 0 : index
    %49 = vector.load %arg7[%c0_22, %c0_23] : memref<32x128xf32, #tpu.memory_space<vmem>>, vector<32x128xf32>
    tpu.vector_store %arg7[%c0_22, %c0_23], %48 {strides = array<i32>} : memref<32x128xf32, #tpu.memory_space<vmem>>, vector<32x128xf32>,
    return
  }
  func.func @transform_0(%arg0: i32) -> (i32, i32) {
    %c0_i32 = arith.constant 0 : i32
    %c0_i32_0 = arith.constant 0 : i32
    return %arg0, %c0_i32 : i32, i32
  }
  func.func @transform_1(%arg0: i32) -> (i32, i32) {
    %c0_i32 = arith.constant 0 : i32
    %c0_i32_0 = arith.constant 0 : i32
    %c0_i32_1 = arith.constant 0 : i32
    return %c0_i32, %c0_i32_0 : i32, i32
  }
  func.func @transform_2(%arg0: i32) -> (i32, i32) {
    %c0_i32 = arith.constant 0 : i32
    %c0_i32_0 = arith.constant 0 : i32
    %c0_i32_1 = arith.constant 0 : i32
    return %c0_i32, %c0_i32_0 : i32, i32
  }
  func.func @transform_3(%arg0: i32) -> (i32, i32) {
    %c0_i32 = arith.constant 0 : i32
    %c0_i32_0 = arith.constant 0 : i32
    %c0_i32_1 = arith.constant 0 : i32
    return %c0_i32, %c0_i32_0 : i32, i32
  }
  func.func @transform_4(%arg0: i32) -> (i32, i32) {
    %c0_i32 = arith.constant 0 : i32
    %c0_i32_0 = arith.constant 0 : i32
    %c0_i32_1 = arith.constant 0 : i32
    return %c0_i32, %c0_i32_0 : i32, i32
  }
  func.func @transform_5(%arg0: i32) -> (i32, i32) {
    %c0_i32 = arith.constant 0 : i32
    %c0_i32_0 = arith.constant 0 : i32
    %c0_i32_1 = arith.constant 0 : i32
    return %c0_i32, %c0_i32_0 : i32, i32
  }
  func.func @transform_6(%arg0: i32) -> (i32, i32) {
    %c0_i32 = arith.constant 0 : i32
    %c0_i32_0 = arith.constant 0 : i32
    return %arg0, %c0_i32 : i32, i32
  }
}

</mosaic_0001>

<llo_original>
// kernel: tile.14
$region0: #{tile.14}
  %s0 = inlined_call_operand.vmem [shape: f32[4,32], index: 0, kind: input, shape index: {}]
  %s1 = inlined_call_operand.vmem [shape: f32[1,128], index: 1, kind: output, shape index: {}]
  $region1: #{tile.14} parent=0
    #allocation0 [shape = 'u8[4096]{0}', space=vmem, size = 0x1000, scoped, tag = 'scoped mem for output reshape']
    #allocation1 [shape = 'u8[4096]{0}', space=vmem, size = 0x1000, scoped, tag = 'scoped mem for input reshape']
    %s3 = ssub.s32 16, 1
    %v4 = vld [vmem:[%s0] sm:%s3]
    %5 = vst [vmem:[#allocation1] sm:%s3] %v4
    %v6 = vld [vmem:[#allocation1] sm:$0x1]
    %vm7 = vcmask 261120
    %8 = vst.msk [vmem:[#allocation0] sm:$0x1] %vm7, %v6
    %s9 = scalar_lea.vmem [#allocation1], 3
    %v10 = vld [vmem:[%s9] sm:$0x1]
    %11 = vrot.lane.b32.xlu0 %v10, 96
    %v12 = vpop.permute.xlu0 %11
    %vm13 = vcmask 1048320
    %14 = vst.msk [vmem:[#allocation0] sm:$0x1] %vm13, %v12
    %s15 = scalar_lea.vmem [#allocation1], 2
    %v16 = vld [vmem:[%s15] sm:$0x1]
    %17 = vrot.lane.b32.xlu0 %v16, 64
    %v18 = vpop.permute.xlu0 %17
    %vm19 = vcmask 785920
    %20 = vst.msk [vmem:[#allocation0] sm:$0x1] %vm19, %v18
    %s21 = scalar_lea.vmem [#allocation1], 1
    %v22 = vld [vmem:[%s21] sm:$0x1]
    %23 = vrot.lane.b32.xlu0 %v22, 32
    %v24 = vpop.permute.xlu0 %23
    %vm25 = vcmask 523520
    %26 = vst.msk [vmem:[#allocation0] sm:$0x1] %vm25, %v24
    %s28 = ssub.s32 2, 1
    %v29 = vld [vmem:[#allocation0] sm:%s28]
    %s31 = ssub.s32 2, 1
    %32 = vst [vmem:[%s1] sm:%s31] %v29

// kernel: tile.13
$region0: #{tile.13}
  #allocation0 [shape = 's32[1]{0}', space=sflag, size = 0x4, scoped, tag = 'scoped memory for tile.13']
  %s0 = inlined_call_operand.vmem [shape: f32[32], index: 0, kind: input, shape index: {}]
  %s1 = inlined_call_operand.vmem [shape: f32[4,32], index: 1, kind: output, shape index: {}]
  // Predicated region
  $region2: #{tile.13} parent=0 // pred_check
    _
  $region3: #{tile.13} parent=0 // pred_check_branch
    %3 = sbr.rel (0) target = $region5
  $region4: #{tile.13} parent=0 // pred_region
    _
  $region5: #{tile.13} parent=0 // pred_fallthru
    _
  %v4 = vld [vmem:[%s0] ss:$0 sm:$0xff]
  %5 = vst [vmem:[%s1] sm:$0xf] %v4

// kernel: _lambda_.2
$region0: #{_lambda_.2}
  #allocation0 [shape = 'u32[]', space=smem, size = 0x4, offset = 0x4, fixed_abs, tag = 'smem constant byte address 0x4 - core index']
  #allocation1 [shape = 'u32[72,128]{1,0:T(1,128)}', space=vmem, size = 0x9000, scoped, tag = 'internal scratch']
  %s0 = inlined_call_operand.vmem [shape: f32[32,128], index: 0, kind: input, shape index: {}]
  %s1 = inlined_call_operand.vmem [shape: f32[1,1,128], index: 1, kind: output, shape index: {0}]
  %s2 = inlined_call_operand.vmem [shape: f32[1,1,128], index: 2, kind: output, shape index: {1}]
  %3 = xla_tuple %s1, %s2
  %s4 = sld [smem:[#allocation0]]
  $region26: #{_lambda_.2} parent=0
    _
  %s6 = ssub.s32 1, %s4
  %s7 = scalar_select 0, %s6, %s4
  // Predicated region
  $region2: #{_lambda_.2} parent=0 // pred_check
    _
  $region3: #{_lambda_.2} parent=0 // pred_check_branch
    %9 = sbr.rel (0) target = $region5
  $region4: #{_lambda_.2} parent=0 // pred_region
    %s10 = sadd.s32 0, 0
    %s11 = smul.u32 4, %s10
    %p12 = scmp.lt.s32.totalorder %s11, 3
    %s13 = scalar_select %p12, %s11, 3
    %s14 = smul.addr %s13, 8
    %s15 = scalar_lea.vmem %s0, %s14
    %s16 = sadd.s32 0, 0
    %s17 = smul.u32 4, %s16
  $region5: #{_lambda_.2} parent=0 // pred_fallthru
    _
  %s18 = sadd.s32 0, 0
  %s19 = smul.u32 4, %s18
  %p20 = scmp.lt.s32.totalorder %s19, 3
  %s21 = scalar_select %p20, %s19, 3
  %s22 = smul.addr %s21, 8
  %s23 = scalar_lea.vmem %s0, %s22
  %s24 = sadd.s32 0, 0
  %s25 = smul.u32 4, %s24
  %p26 = scmp.lt.s32.totalorder %s25, 3
  %s27 = scalar_select %p26, %s25, 3
  %s28 = smul.addr %s27, 8
  %s29 = scalar_lea.vmem %s0, %s28
  %s30 = sadd.s32 0, 0
  %s31 = smul.u32 4, %s30
  %p32 = scmp.eq.s32.totalorder 0, 0
  // Predicated region
  $region6: #{_lambda_.2} parent=0 // pred_check
    %p33 = pneg %p32
  $region7: #{_lambda_.2} parent=0 // pred_check_branch
    %35 = sbr.rel (%p33) target = $region9
  $region8: #{_lambda_.2} parent=0 // pred_region
    %36 = vst [vmem:[%s1] sm:$0x1] 0.0
    %37 = vst [vmem:[%s2] sm:$0x1] 0.0
  $region9: #{_lambda_.2} parent=0 // pred_fallthru
    _
  %v38 = vld [vmem:[%s29] sm:$0xff]
  %v39 = vld [vmem:[%s29 + $0x8] sm:$0xff]
  %v40 = vld [vmem:[%s29 + $0x10] sm:$0xff]
  %v41 = vld [vmem:[%s29 + $0x18] sm:$0xff]
  %v42 = vld [vmem:[%s1] sm:$0x1]
  %v43 = vadd.f32 %v38, %v39
  %v44 = vadd.f32 %v43, %v40
  %v45 = vadd.f32 %v44, %v41
  %v46 = vrot.slane %v45, 4
  %v47 = vadd.f32 %v45, %v46
  %v48 = vrot.slane %v47, 2
  %v49 = vadd.f32 %v47, %v48
  %v50 = vrot.slane %v49, 1
  %v51 = vadd.f32 %v49, %v50
  %v52 = vadd.f32 %v42, %v51
  %53 = vst [vmem:[%s1] sm:$0x1] %v52
  %v54 = vld [vmem:[%s2] sm:$0x1]
  %v55 = vmul.f32 %v38, %v38
  %v56 = vmul.f32 %v39, %v39
  %v57 = vmul.f32 %v40, %v40
  %v58 = vmul.f32 %v41, %v41
  %v59 = vadd.f32 %v55, %v56
  %v60 = vadd.f32 %v59, %v57
  %v61 = vadd.f32 %v60, %v58
  %v62 = vrot.slane %v61, 4
  %v63 = vadd.f32 %v61, %v62
  %v64 = vrot.slane %v63, 2
  %v65 = vadd.f32 %v63, %v64
  %v66 = vrot.slane %v65, 1
  %v67 = vadd.f32 %v65, %v66
  %v68 = vadd.f32 %v54, %v67
  %69 = vst [vmem:[%s2] sm:$0x1] %v68
  // Predicated region
  $region10: #{_lambda_.2} parent=0 // pred_check
    _
  $region11: #{_lambda_.2} parent=0 // pred_check_branch
    %71 = sbr.rel (0) target = $region13
  $region12: #{_lambda_.2} parent=0 // pred_region
    _
  $region13: #{_lambda_.2} parent=0 // pred_fallthru
    _
  // Predicated region
  $region14: #{_lambda_.2} parent=0 // pred_check
    _
  $region15: #{_lambda_.2} parent=0 // pred_check_branch
    %73 = sbr.rel (0) target = $region17
  $region16: #{_lambda_.2} parent=0 // pred_region
    _
  $region17: #{_lambda_.2} parent=0 // pred_fallthru
    _
  // Predicated region
  $region18: #{_lambda_.2} parent=0 // pred_check
    _
  $region19: #{_lambda_.2} parent=0 // pred_check_branch
    %75 = sbr.rel (0) target = $region21
  $region20: #{_lambda_.2} parent=0 // pred_region
    _
  $region21: #{_lambda_.2} parent=0 // pred_fallthru
    _
  // Predicated region
  $region22: #{_lambda_.2} parent=0 // pred_check
    _
  $region23: #{_lambda_.2} parent=0 // pred_check_branch
    %77 = sbr.rel (0) target = $region25
  $region24: #{_lambda_.2} parent=0 // pred_region
    _
  $region25: #{_lambda_.2} parent=0 // pred_fallthru
    _

// kernel: _lambda_.3
$region0: #{_lambda_.3}
  #allocation0 [shape = 'u32[]', space=smem, size = 0x4, offset = 0x4, fixed_abs, tag = 'smem constant byte address 0x4 - core index']
  #allocation1 [shape = 'u32[72,128]{1,0:T(1,128)}', space=vmem, size = 0x9000, scoped, tag = 'internal scratch']
  %s0 = inlined_call_operand.vmem [shape: f32[32,128], index: 0, kind: input, shape index: {}, may-alias: {0,6}]
  %s1 = inlined_call_operand.vmem [shape: f32[1,128], index: 1, kind: input, shape index: {}]
  %s2 = inlined_call_operand.vmem [shape: f32[1,128], index: 2, kind: input, shape index: {}]
  %s3 = inlined_call_operand.vmem [shape: f32[1,128], index: 3, kind: input, shape index: {}]
  %s4 = inlined_call_operand.vmem [shape: f32[1,128], index: 4, kind: input, shape index: {}]
  %s5 = inlined_call_operand.vmem [shape: f32[128,128], index: 5, kind: input, shape index: {}]
  %s6 = inlined_call_operand.vmem [shape: f32[32,128], index: 6, kind: output, shape index: {}, may-alias: {0,6}]
  %s7 = sld [smem:[#allocation0]]
  $region34: #{_lambda_.3} parent=0
    _
  %s9 = ssub.s32 1, %s7
  %s10 = scalar_select 0, %s9, %s7
  // Predicated region
  $region2: #{_lambda_.3} parent=0 // pred_check
    _
  $region3: #{_lambda_.3} parent=0 // pred_check_branch
    %12 = sbr.rel (0) target = $region5
  $region4: #{_lambda_.3} parent=0 // pred_region
    _
  $region5: #{_lambda_.3} parent=0 // pred_fallthru
    _
  // Predicated region
  $region6: #{_lambda_.3} parent=0 // pred_check
    _
  $region7: #{_lambda_.3} parent=0 // pred_check_branch
    %14 = sbr.rel (0) target = $region9
  $region8: #{_lambda_.3} parent=0 // pred_region
    _
  $region9: #{_lambda_.3} parent=0 // pred_fallthru
    _
  // Predicated region
  $region10: #{_lambda_.3} parent=0 // pred_check
    _
  $region11: #{_lambda_.3} parent=0 // pred_check_branch
    %16 = sbr.rel (0) target = $region13
  $region12: #{_lambda_.3} parent=0 // pred_region
    _
  $region13: #{_lambda_.3} parent=0 // pred_fallthru
    _
  // Predicated region
  $region14: #{_lambda_.3} parent=0 // pred_check
    _
  $region15: #{_lambda_.3} parent=0 // pred_check_branch
    %18 = sbr.rel (0) target = $region17
  $region16: #{_lambda_.3} parent=0 // pred_region
    _
  $region17: #{_lambda_.3} parent=0 // pred_fallthru
    _
  // Predicated region
  $region18: #{_lambda_.3} parent=0 // pred_check
    _
  $region19: #{_lambda_.3} parent=0 // pred_check_branch
    %20 = sbr.rel (0) target = $region21
  $region20: #{_lambda_.3} parent=0 // pred_region
    _
  $region21: #{_lambda_.3} parent=0 // pred_fallthru
    _
  // Predicated region
  $region22: #{_lambda_.3} parent=0 // pred_check
    _
  $region23: #{_lambda_.3} parent=0 // pred_check_branch
    %22 = sbr.rel (0) target = $region25
  $region24: #{_lambda_.3} parent=0 // pred_region
    _
  $region25: #{_lambda_.3} parent=0 // pred_fallthru
    _
  %v23 = vld [vmem:[%s1] sm:$0x1]
  %v24 = vadd.f32 %v23, 0.0
  %v25 = vld [vmem:[%s2] sm:$0x1]
  %v26 = vadd.f32 %v25, 0.0
  %27 = vrot.lane.b32.xlu0 %v24, 32
  %v28 = vpop.permute.xlu0 %27
  %v29 = vadd.f32 %v24, %v28
  %30 = vrot.lane.b32.xlu0 %v26, 32
  %v31 = vpop.permute.xlu0 %30
  %v32 = vadd.f32 %v26, %v31
  %33 = vrot.lane.b32.xlu0 %v24, 64
  %v34 = vpop.permute.xlu0 %33
  %v35 = vadd.f32 %v29, %v34
  %36 = vrot.lane.b32.xlu0 %v26, 64
  %v37 = vpop.permute.xlu0 %36
  %v38 = vadd.f32 %v32, %v37
  %39 = vrot.lane.b32.xlu0 %v24, 96
  %v40 = vpop.permute.xlu0 %39
  %v41 = vadd.f32 %v35, %v40
  %42 = vrot.lane.b32.xlu0 %v26, 96
  %v43 = vpop.permute.xlu0 %42
  %v44 = vadd.f32 %v38, %v43
  %v45 = vmul.f32 %v41, 0.0078125
  %v46 = vmul.f32 %v44, 0.0078125
  %v47 = vmul.f32 %v45, %v45
  %v48 = vsub.f32 %v46, %v47
  %v49 = vmax.f32 %v48, 0.0
  %v50 = vadd.f32 %v49, 0.0001
  %v51 = vrsqrt.pop %v50
  %v52 = vmul.f32 %v51, %v50
  %v53 = vmul.f32 %v52, %v51
  %v54 = vmul.f32 0.5, %v53
  %v55 = vsub.f32 1.5, %v54
  %v56 = vmul.f32 %v51, %v55
  %vm57 = vweird.f32 %v50
  %vm58 = vweird.f32 %v51
  %vm59 = vmor %vm57, %vm58
  %v60 = vsel %vm59, %v51, %v56
  %v61 = vld [vmem:[%s3] sm:$0x1]
  %v62 = vmul.f32 %v61, %v60
  %v63 = vld [vmem:[%s4] sm:$0x1]
  %v64 = vmul.f32 %v45, %v62
  %v65 = vsub.f32 %v63, %v64
  %v66 = vld [vmem:[%s0] sm:$0xff]
  %v67 = vld [vmem:[%s0 + $0x8] sm:$0xff]
  %v68 = vld [vmem:[%s0 + $0x10] sm:$0xff]
  %v69 = vld [vmem:[%s0 + $0x18] sm:$0xff]
  %v71 = vperm.slane %v62, 0
  %v73 = vmul.f32 %v66, %v71
  %v74 = vmul.f32 %v67, %v71
  %v75 = vmul.f32 %v68, %v71
  %v76 = vmul.f32 %v69, %v71
  %v78 = vperm.slane %v65, 0
  %v80 = vadd.f32 %v73, %v78
  %v81 = vadd.f32 %v74, %v78
  %v82 = vadd.f32 %v75, %v78
  %v83 = vadd.f32 %v76, %v78
  %v84 = vmul.f32 %v66, %v66
  %v85 = vmul.f32 %v67, %v67
  %v86 = vmul.f32 %v68, %v68
  %v87 = vmul.f32 %v69, %v69
  %v88 = vld [vmem:[%s5] sm:$0xff]
  %v89 = vld [vmem:[%s5 + $0x8] sm:$0xff]
  %v90 = vld [vmem:[%s5 + $0x10] sm:$0xff]
  %v91 = vld [vmem:[%s5 + $0x18] sm:$0xff]
  %v92 = vld [vmem:[%s5 + $0x20] sm:$0xff]
  %v93 = vld [vmem:[%s5 + $0x28] sm:$0xff]
  %v94 = vld [vmem:[%s5 + $0x30] sm:$0xff]
  %v95 = vld [vmem:[%s5 + $0x38] sm:$0xff]
  %v96 = vld [vmem:[%s5 + $0x40] sm:$0xff]
  %v97 = vld [vmem:[%s5 + $0x48] sm:$0xff]
  %v98 = vld [vmem:[%s5 + $0x50] sm:$0xff]
  %v99 = vld [vmem:[%s5 + $0x58] sm:$0xff]
  %v100 = vld [vmem:[%s5 + $0x60] sm:$0xff]
  %v101 = vld [vmem:[%s5 + $0x68] sm:$0xff]
  %v102 = vld [vmem:[%s5 + $0x70] sm:$0xff]
  %v103 = vld [vmem:[%s5 + $0x78] sm:$0xff]
  %v104 = vand.u32 %v103, 4294901760
  %105 = vmatpush.msra.mxu0 %v104
  %v106 = vand.u32 %v102, 4294901760
  %107 = vmatpush.msra.mxu0 %v106
  %v108 = vand.u32 %v101, 4294901760
  %109 = vmatpush.msra.mxu0 %v108
  %v110 = vand.u32 %v100, 4294901760
  %111 = vmatpush.msra.mxu0 %v110
  %v112 = vand.u32 %v99, 4294901760
  %113 = vmatpush.msra.mxu0 %v112
  %v114 = vand.u32 %v98, 4294901760
  %115 = vmatpush.msra.mxu0 %v114
  %v116 = vand.u32 %v97, 4294901760
  %117 = vmatpush.msra.mxu0 %v116
  %v118 = vand.u32 %v96, 4294901760
  %119 = vmatpush.msra.mxu0 %v118
  %v120 = vand.u32 %v95, 4294901760
  %121 = vmatpush.msra.mxu0 %v120
  %v122 = vand.u32 %v94, 4294901760
  %123 = vmatpush.msra.mxu0 %v122
  %v124 = vand.u32 %v93, 4294901760
  %125 = vmatpush.msra.mxu0 %v124
  %v126 = vand.u32 %v92, 4294901760
  %127 = vmatpush.msra.mxu0 %v126
  %v128 = vand.u32 %v91, 4294901760
  %129 = vmatpush.msra.mxu0 %v128
  %v130 = vand.u32 %v90, 4294901760
  %131 = vmatpush.msra.mxu0 %v130
  %v132 = vand.u32 %v89, 4294901760
  %133 = vmatpush.msra.mxu0 %v132
  %v134 = vand.u32 %v88, 4294901760
  %135 = vmatpush.msra.mxu0 %v134
  %v136 = vand.u32 %v84, 4294901760
  %v137 = vsub.f32 %v84, %v136
  %v138 = vand.u32 %v137, 4294901760
  %v139 = vsub.f32 %v137, %v138
  %v140 = vand.u32 %v139, 4294901760
  %141 = vmatmul.f32.gmra.mxu0 %v140
  %v142 = vpop.f32.mrf.mxu0
  %v143 = vadd.f32 0.0, %v142
  %v144 = vand.u32 %v85, 4294901760
  %v145 = vsub.f32 %v85, %v144
  %v146 = vand.u32 %v145, 4294901760
  %v147 = vsub.f32 %v145, %v146
  %v148 = vand.u32 %v147, 4294901760
  %149 = vmatmul.f32.gmra.mxu0 %v148
  %v150 = vpop.f32.mrf.mxu0
  %v151 = vadd.f32 0.0, %v150
  %v152 = vand.u32 %v86, 4294901760
  %v153 = vsub.f32 %v86, %v152
  %v154 = vand.u32 %v153, 4294901760
  %v155 = vsub.f32 %v153, %v154
  %v156 = vand.u32 %v155, 4294901760
  %157 = vmatmul.f32.gmra.mxu0 %v156
  %v158 = vpop.f32.mrf.mxu0
  %v159 = vadd.f32 0.0, %v158
  %v160 = vand.u32 %v87, 4294901760
  %v161 = vsub.f32 %v87, %v160
  %v162 = vand.u32 %v161, 4294901760
  %v163 = vsub.f32 %v161, %v162
  %v164 = vand.u32 %v163, 4294901760
  %165 = vmatmul.f32.gmra.mxu0 %v164
  %v166 = vpop.f32.mrf.mxu0
  %v167 = vadd.f32 0.0, %v166
  %168 = vdwg.mxu0
  %v169 = vand.u32 %v103, 4294901760
  %v170 = vsub.f32 %v103, %v169
  %v171 = vand.u32 %v170, 4294901760
  %v172 = vsub.f32 %v170, %v171
  %v173 = vand.u32 %v172, 4294901760
  %174 = vmatpush.msra.mxu0 %v173
  %v175 = vand.u32 %v102, 4294901760
  %v176 = vsub.f32 %v102, %v175
  %v177 = vand.u32 %v176, 4294901760
  %v178 = vsub.f32 %v176, %v177
  %v179 = vand.u32 %v178, 4294901760
  %180 = vmatpush.msra.mxu0 %v179
  %v181 = vand.u32 %v101, 4294901760
  %v182 = vsub.f32 %v101, %v181
  %v183 = vand.u32 %v182, 4294901760
  %v184 = vsub.f32 %v182, %v183
  %v185 = vand.u32 %v184, 4294901760
  %186 = vmatpush.msra.mxu0 %v185
  %v187 = vand.u32 %v100, 4294901760
  %v188 = vsub.f32 %v100, %v187
  %v189 = vand.u32 %v188, 4294901760
  %v190 = vsub.f32 %v188, %v189
  %v191 = vand.u32 %v190, 4294901760
  %192 = vmatpush.msra.mxu0 %v191
  %v193 = vand.u32 %v99, 4294901760
  %v194 = vsub.f32 %v99, %v193
  %v195 = vand.u32 %v194, 4294901760
  %v196 = vsub.f32 %v194, %v195
  %v197 = vand.u32 %v196, 4294901760
  %198 = vmatpush.msra.mxu0 %v197
  %v199 = vand.u32 %v98, 4294901760
  %v200 = vsub.f32 %v98, %v199
  %v201 = vand.u32 %v200, 4294901760
  %v202 = vsub.f32 %v200, %v201
  %v203 = vand.u32 %v202, 4294901760
  %204 = vmatpush.msra.mxu0 %v203
  %v205 = vand.u32 %v97, 4294901760
  %v206 = vsub.f32 %v97, %v205
  %v207 = vand.u32 %v206, 4294901760
  %v208 = vsub.f32 %v206, %v207
  %v209 = vand.u32 %v208, 4294901760
  %210 = vmatpush.msra.mxu0 %v209
  %v211 = vand.u32 %v96, 4294901760
  %v212 = vsub.f32 %v96, %v211
  %v213 = vand.u32 %v212, 4294901760
  %v214 = vsub.f32 %v212, %v213
  %v215 = vand.u32 %v214, 4294901760
  %216 = vmatpush.msra.mxu0 %v215
  %v217 = vand.u32 %v95, 4294901760
  %v218 = vsub.f32 %v95, %v217
  %v219 = vand.u32 %v218, 4294901760
  %v220 = vsub.f32 %v218, %v219
  %v221 = vand.u32 %v220, 4294901760
  %222 = vmatpush.msra.mxu0 %v221
  %v223 = vand.u32 %v94, 4294901760
  %v224 = vsub.f32 %v94, %v223
  %v225 = vand.u32 %v224, 4294901760
  %v226 = vsub.f32 %v224, %v225
  %v227 = vand.u32 %v226, 4294901760
  %228 = vmatpush.msra.mxu0 %v227
  %v229 = vand.u32 %v93, 4294901760
  %v230 = vsub.f32 %v93, %v229
  %v231 = vand.u32 %v230, 4294901760
  %v232 = vsub.f32 %v230, %v231
  %v233 = vand.u32 %v232, 4294901760
  %234 = vmatpush.msra.mxu0 %v233
  %v235 = vand.u32 %v92, 4294901760
  %v236 = vsub.f32 %v92, %v235
  %v237 = vand.u32 %v236, 4294901760
  %v238 = vsub.f32 %v236, %v237
  %v239 = vand.u32 %v238, 4294901760
  %240 = vmatpush.msra.mxu0 %v239
  %v241 = vand.u32 %v91, 4294901760
  %v242 = vsub.f32 %v91, %v241
  %v243 = vand.u32 %v242, 4294901760
  %v244 = vsub.f32 %v242, %v243
  %v245 = vand.u32 %v244, 4294901760
  %246 = vmatpush.msra.mxu0 %v245
  %v247 = vand.u32 %v90, 4294901760
  %v248 = vsub.f32 %v90, %v247
  %v249 = vand.u32 %v248, 4294901760
  %v250 = vsub.f32 %v248, %v249
  %v251 = vand.u32 %v250, 4294901760
  %252 = vmatpush.msra.mxu0 %v251
  %v253 = vand.u32 %v89, 4294901760
  %v254 = vsub.f32 %v89, %v253
  %v255 = vand.u32 %v254, 4294901760
  %v256 = vsub.f32 %v254, %v255
  %v257 = vand.u32 %v256, 4294901760
  %258 = vmatpush.msra.mxu0 %v257
  %v259 = vand.u32 %v88, 4294901760
  %v260 = vsub.f32 %v88, %v259
  %v261 = vand.u32 %v260, 4294901760
  %v262 = vsub.f32 %v260, %v261
  %v263 = vand.u32 %v262, 4294901760
  %264 = vmatpush.msra.mxu0 %v263
  %v265 = vand.u32 %v84, 4294901760
  %266 = vmatmul.f32.gmra.mxu0 %v265
  %v267 = vpop.f32.mrf.mxu0
  %v268 = vadd.f32 %v143, %v267
  %v269 = vand.u32 %v85, 4294901760
  %270 = vmatmul.f32.gmra.mxu0 %v269
  %v271 = vpop.f32.mrf.mxu0
  %v272 = vadd.f32 %v151, %v271
  %v273 = vand.u32 %v86, 4294901760
  %274 = vmatmul.f32.gmra.mxu0 %v273
  %v275 = vpop.f32.mrf.mxu0
  %v276 = vadd.f32 %v159, %v275
  %v277 = vand.u32 %v87, 4294901760
  %278 = vmatmul.f32.gmra.mxu0 %v277
  %v279 = vpop.f32.mrf.mxu0
  %v280 = vadd.f32 %v167, %v279
  %281 = vdwg.mxu0
  %v282 = vand.u32 %v103, 4294901760
  %v283 = vsub.f32 %v103, %v282
  %284 = vmatpush.msra.mxu0 %v283
  %v285 = vand.u32 %v102, 4294901760
  %v286 = vsub.f32 %v102, %v285
  %287 = vmatpush.msra.mxu0 %v286
  %v288 = vand.u32 %v101, 4294901760
  %v289 = vsub.f32 %v101, %v288
  %290 = vmatpush.msra.mxu0 %v289
  %v291 = vand.u32 %v100, 4294901760
  %v292 = vsub.f32 %v100, %v291
  %293 = vmatpush.msra.mxu0 %v292
  %v294 = vand.u32 %v99, 4294901760
  %v295 = vsub.f32 %v99, %v294
  %296 = vmatpush.msra.mxu0 %v295
  %v297 = vand.u32 %v98, 4294901760
  %v298 = vsub.f32 %v98, %v297
  %299 = vmatpush.msra.mxu0 %v298
  %v300 = vand.u32 %v97, 4294901760
  %v301 = vsub.f32 %v97, %v300
  %302 = vmatpush.msra.mxu0 %v301
  %v303 = vand.u32 %v96, 4294901760
  %v304 = vsub.f32 %v96, %v303
  %305 = vmatpush.msra.mxu0 %v304
  %v306 = vand.u32 %v95, 4294901760
  %v307 = vsub.f32 %v95, %v306
  %308 = vmatpush.msra.mxu0 %v307
  %v309 = vand.u32 %v94, 4294901760
  %v310 = vsub.f32 %v94, %v309
  %311 = vmatpush.msra.mxu0 %v310
  %v312 = vand.u32 %v93, 4294901760
  %v313 = vsub.f32 %v93, %v312
  %314 = vmatpush.msra.mxu0 %v313
  %v315 = vand.u32 %v92, 4294901760
  %v316 = vsub.f32 %v92, %v315
  %317 = vmatpush.msra.mxu0 %v316
  %v318 = vand.u32 %v91, 4294901760
  %v319 = vsub.f32 %v91, %v318
  %320 = vmatpush.msra.mxu0 %v319
  %v321 = vand.u32 %v90, 4294901760
  %v322 = vsub.f32 %v90, %v321
  %323 = vmatpush.msra.mxu0 %v322
  %v324 = vand.u32 %v89, 4294901760
  %v325 = vsub.f32 %v89, %v324
  %326 = vmatpush.msra.mxu0 %v325
  %v327 = vand.u32 %v88, 4294901760
  %v328 = vsub.f32 %v88, %v327
  %329 = vmatpush.msra.mxu0 %v328
  %v330 = vand.u32 %v84, 4294901760
  %v331 = vsub.f32 %v84, %v330
  %332 = vmatmul.f32.gmra.mxu0 %v331
  %v333 = vpop.f32.mrf.mxu0
  %v334 = vadd.f32 %v268, %v333
  %v335 = vand.u32 %v85, 4294901760
  %v336 = vsub.f32 %v85, %v335
  %337 = vmatmul.f32.gmra.mxu0 %v336
  %v338 = vpop.f32.mrf.mxu0
  %v339 = vadd.f32 %v272, %v338
  %v340 = vand.u32 %v86, 4294901760
  %v341 = vsub.f32 %v86, %v340
  %342 = vmatmul.f32.gmra.mxu0 %v341
  %v343 = vpop.f32.mrf.mxu0
  %v344 = vadd.f32 %v276, %v343
  %v345 = vand.u32 %v87, 4294901760
  %v346 = vsub.f32 %v87, %v345
  %347 = vmatmul.f32.gmra.mxu0 %v346
  %v348 = vpop.f32.mrf.mxu0
  %v349 = vadd.f32 %v280, %v348
  %350 = vdwg.mxu0
  %v351 = vand.u32 %v103, 4294901760
  %352 = vmatpush.msra.mxu0 %v351
  %v353 = vand.u32 %v102, 4294901760
  %354 = vmatpush.msra.mxu0 %v353
  %v355 = vand.u32 %v101, 4294901760
  %356 = vmatpush.msra.mxu0 %v355
  %v357 = vand.u32 %v100, 4294901760
  %358 = vmatpush.msra.mxu0 %v357
  %v359 = vand.u32 %v99, 4294901760
  %360 = vmatpush.msra.mxu0 %v359
  %v361 = vand.u32 %v98, 4294901760
  %362 = vmatpush.msra.mxu0 %v361
  %v363 = vand.u32 %v97, 4294901760
  %364 = vmatpush.msra.mxu0 %v363
  %v365 = vand.u32 %v96, 4294901760
  %366 = vmatpush.msra.mxu0 %v365
  %v367 = vand.u32 %v95, 4294901760
  %368 = vmatpush.msra.mxu0 %v367
  %v369 = vand.u32 %v94, 4294901760
  %370 = vmatpush.msra.mxu0 %v369
  %v371 = vand.u32 %v93, 4294901760
  %372 = vmatpush.msra.mxu0 %v371
  %v373 = vand.u32 %v92, 4294901760
  %374 = vmatpush.msra.mxu0 %v373
  %v375 = vand.u32 %v91, 4294901760
  %376 = vmatpush.msra.mxu0 %v375
  %v377 = vand.u32 %v90, 4294901760
  %378 = vmatpush.msra.mxu0 %v377
  %v379 = vand.u32 %v89, 4294901760
  %380 = vmatpush.msra.mxu0 %v379
  %v381 = vand.u32 %v88, 4294901760
  %382 = vmatpush.msra.mxu0 %v381
  %v383 = vand.u32 %v84, 4294901760
  %v384 = vsub.f32 %v84, %v383
  %v385 = vand.u32 %v384, 4294901760
  %386 = vmatmul.f32.gmra.mxu0 %v385
  %v387 = vpop.f32.mrf.mxu0
  %v388 = vadd.f32 %v334, %v387
  %v389 = vand.u32 %v85, 4294901760
  %v390 = vsub.f32 %v85, %v389
  %v391 = vand.u32 %v390, 4294901760
  %392 = vmatmul.f32.gmra.mxu0 %v391
  %v393 = vpop.f32.mrf.mxu0
  %v394 = vadd.f32 %v339, %v393
  %v395 = vand.u32 %v86, 4294901760
  %v396 = vsub.f32 %v86, %v395
  %v397 = vand.u32 %v396, 4294901760
  %398 = vmatmul.f32.gmra.mxu0 %v397
  %v399 = vpop.f32.mrf.mxu0
  %v400 = vadd.f32 %v344, %v399
  %v401 = vand.u32 %v87, 4294901760
  %v402 = vsub.f32 %v87, %v401
  %v403 = vand.u32 %v402, 4294901760
  %404 = vmatmul.f32.gmra.mxu0 %v403
  %v405 = vpop.f32.mrf.mxu0
  %v406 = vadd.f32 %v349, %v405
  %407 = vdwg.mxu0
  %v408 = vand.u32 %v103, 4294901760
  %v409 = vsub.f32 %v103, %v408
  %v410 = vand.u32 %v409, 4294901760
  %411 = vmatpush.msra.mxu0 %v410
  %v412 = vand.u32 %v102, 4294901760
  %v413 = vsub.f32 %v102, %v412
  %v414 = vand.u32 %v413, 4294901760
  %415 = vmatpush.msra.mxu0 %v414
  %v416 = vand.u32 %v101, 4294901760
  %v417 = vsub.f32 %v101, %v416
  %v418 = vand.u32 %v417, 4294901760
  %419 = vmatpush.msra.mxu0 %v418
  %v420 = vand.u32 %v100, 4294901760
  %v421 = vsub.f32 %v100, %v420
  %v422 = vand.u32 %v421, 4294901760
  %423 = vmatpush.msra.mxu0 %v422
  %v424 = vand.u32 %v99, 4294901760
  %v425 = vsub.f32 %v99, %v424
  %v426 = vand.u32 %v425, 4294901760
  %427 = vmatpush.msra.mxu0 %v426
  %v428 = vand.u32 %v98, 4294901760
  %v429 = vsub.f32 %v98, %v428
  %v430 = vand.u32 %v429, 4294901760
  %431 = vmatpush.msra.mxu0 %v430
  %v432 = vand.u32 %v97, 4294901760
  %v433 = vsub.f32 %v97, %v432
  %v434 = vand.u32 %v433, 4294901760
  %435 = vmatpush.msra.mxu0 %v434
  %v436 = vand.u32 %v96, 4294901760
  %v437 = vsub.f32 %v96, %v436
  %v438 = vand.u32 %v437, 4294901760
  %439 = vmatpush.msra.mxu0 %v438
  %v440 = vand.u32 %v95, 4294901760
  %v441 = vsub.f32 %v95, %v440
  %v442 = vand.u32 %v441, 4294901760
  %443 = vmatpush.msra.mxu0 %v442
  %v444 = vand.u32 %v94, 4294901760
  %v445 = vsub.f32 %v94, %v444
  %v446 = vand.u32 %v445, 4294901760
  %447 = vmatpush.msra.mxu0 %v446
  %v448 = vand.u32 %v93, 4294901760
  %v449 = vsub.f32 %v93, %v448
  %v450 = vand.u32 %v449, 4294901760
  %451 = vmatpush.msra.mxu0 %v450
  %v452 = vand.u32 %v92, 4294901760
  %v453 = vsub.f32 %v92, %v452
  %v454 = vand.u32 %v453, 4294901760
  %455 = vmatpush.msra.mxu0 %v454
  %v456 = vand.u32 %v91, 4294901760
  %v457 = vsub.f32 %v91, %v456
  %v458 = vand.u32 %v457, 4294901760
  %459 = vmatpush.msra.mxu0 %v458
  %v460 = vand.u32 %v90, 4294901760
  %v461 = vsub.f32 %v90, %v460
  %v462 = vand.u32 %v461, 4294901760
  %463 = vmatpush.msra.mxu0 %v462
  %v464 = vand.u32 %v89, 4294901760
  %v465 = vsub.f32 %v89, %v464
  %v466 = vand.u32 %v465, 4294901760
  %467 = vmatpush.msra.mxu0 %v466
  %v468 = vand.u32 %v88, 4294901760
  %v469 = vsub.f32 %v88, %v468
  %v470 = vand.u32 %v469, 4294901760
  %471 = vmatpush.msra.mxu0 %v470
  %v472 = vand.u32 %v84, 4294901760
  %473 = vmatmul.f32.gmra.mxu0 %v472
  %v474 = vpop.f32.mrf.mxu0
  %v475 = vadd.f32 %v388, %v474
  %v476 = vand.u32 %v85, 4294901760
  %477 = vmatmul.f32.gmra.mxu0 %v476
  %v478 = vpop.f32.mrf.mxu0
  %v479 = vadd.f32 %v394, %v478
  %v480 = vand.u32 %v86, 4294901760
  %481 = vmatmul.f32.gmra.mxu0 %v480
  %v482 = vpop.f32.mrf.mxu0
  %v483 = vadd.f32 %v400, %v482
  %v484 = vand.u32 %v87, 4294901760
  %485 = vmatmul.f32.gmra.mxu0 %v484
  %v486 = vpop.f32.mrf.mxu0
  %v487 = vadd.f32 %v406, %v486
  %488 = vdwg.mxu0
  %v489 = vand.u32 %v103, 4294901760
  %490 = vmatpush.msra.mxu0 %v489
  %v491 = vand.u32 %v102, 4294901760
  %492 = vmatpush.msra.mxu0 %v491
  %v493 = vand.u32 %v101, 4294901760
  %494 = vmatpush.msra.mxu0 %v493
  %v495 = vand.u32 %v100, 4294901760
  %496 = vmatpush.msra.mxu0 %v495
  %v497 = vand.u32 %v99, 4294901760
  %498 = vmatpush.msra.mxu0 %v497
  %v499 = vand.u32 %v98, 4294901760
  %500 = vmatpush.msra.mxu0 %v499
  %v501 = vand.u32 %v97, 4294901760
  %502 = vmatpush.msra.mxu0 %v501
  %v503 = vand.u32 %v96, 4294901760
  %504 = vmatpush.msra.mxu0 %v503
  %v505 = vand.u32 %v95, 4294901760
  %506 = vmatpush.msra.mxu0 %v505
  %v507 = vand.u32 %v94, 4294901760
  %508 = vmatpush.msra.mxu0 %v507
  %v509 = vand.u32 %v93, 4294901760
  %510 = vmatpush.msra.mxu0 %v509
  %v511 = vand.u32 %v92, 4294901760
  %512 = vmatpush.msra.mxu0 %v511
  %v513 = vand.u32 %v91, 4294901760
  %514 = vmatpush.msra.mxu0 %v513
  %v515 = vand.u32 %v90, 4294901760
  %516 = vmatpush.msra.mxu0 %v515
  %v517 = vand.u32 %v89, 4294901760
  %518 = vmatpush.msra.mxu0 %v517
  %v519 = vand.u32 %v88, 4294901760
  %520 = vmatpush.msra.mxu0 %v519
  %v521 = vand.u32 %v84, 4294901760
  %522 = vmatmul.f32.gmra.mxu0 %v521
  %v523 = vpop.f32.mrf.mxu0
  %v524 = vadd.f32 %v475, %v523
  %v525 = vand.u32 %v85, 4294901760
  %526 = vmatmul.f32.gmra.mxu0 %v525
  %v527 = vpop.f32.mrf.mxu0
  %v528 = vadd.f32 %v479, %v527
  %v529 = vand.u32 %v86, 4294901760
  %530 = vmatmul.f32.gmra.mxu0 %v529
  %v531 = vpop.f32.mrf.mxu0
  %v532 = vadd.f32 %v483, %v531
  %v533 = vand.u32 %v87, 4294901760
  %534 = vmatmul.f32.gmra.mxu0 %v533
  %v535 = vpop.f32.mrf.mxu0
  %v536 = vadd.f32 %v487, %v535
  %537 = vdwg.mxu0
  %v538 = vmax.f32 %v524, 0.0001
  %v539 = vmax.f32 %v528, 0.0001
  %v540 = vmax.f32 %v532, 0.0001
  %v541 = vmax.f32 %v536, 0.0001
  %v542 = vrsqrt.pop %v538
  %v543 = vmul.f32 %v542, %v538
  %v544 = vmul.f32 %v543, %v542
  %v545 = vmul.f32 0.5, %v544
  %v546 = vsub.f32 1.5, %v545
  %v547 = vmul.f32 %v542, %v546
  %vm548 = vweird.f32 %v538
  %vm549 = vweird.f32 %v542
  %vm550 = vmor %vm548, %vm549
  %v551 = vsel %vm550, %v542, %v547
  %v552 = vrsqrt.pop %v539
  %v553 = vmul.f32 %v552, %v539
  %v554 = vmul.f32 %v553, %v552
  %v555 = vmul.f32 0.5, %v554
  %v556 = vsub.f32 1.5, %v555
  %v557 = vmul.f32 %v552, %v556
  %vm558 = vweird.f32 %v539
  %vm559 = vweird.f32 %v552
  %vm560 = vmor %vm558, %vm559
  %v561 = vsel %vm560, %v552, %v557
  %v562 = vrsqrt.pop %v540
  %v563 = vmul.f32 %v562, %v540
  %v564 = vmul.f32 %v563, %v562
  %v565 = vmul.f32 0.5, %v564
  %v566 = vsub.f32 1.5, %v565
  %v567 = vmul.f32 %v562, %v566
  %vm568 = vweird.f32 %v540
  %vm569 = vweird.f32 %v562
  %vm570 = vmor %vm568, %vm569
  %v571 = vsel %vm570, %v562, %v567
  %v572 = vrsqrt.pop %v541
  %v573 = vmul.f32 %v572, %v541
  %v574 = vmul.f32 %v573, %v572
  %v575 = vmul.f32 0.5, %v574
  %v576 = vsub.f32 1.5, %v575
  %v577 = vmul.f32 %v572, %v576
  %vm578 = vweird.f32 %v541
  %vm579 = vweird.f32 %v572
  %vm580 = vmor %vm578, %vm579
  %v581 = vsel %vm580, %v572, %v577
  %v582 = vmax.f32 %v80, 0.0
  %v583 = vmax.f32 %v81, 0.0
  %v584 = vmax.f32 %v82, 0.0
  %v585 = vmax.f32 %v83, 0.0
  %v586 = vmul.f32 %v582, %v551
  %v587 = vmul.f32 %v583, %v561
  %v588 = vmul.f32 %v584, %v571
  %v589 = vmul.f32 %v585, %v581
  %v590 = vmul.f32 %v586, %v66
  %v591 = vmul.f32 %v587, %v67
  %v592 = vmul.f32 %v588, %v68
  %v593 = vmul.f32 %v589, %v69
  %594 = vst [vmem:[%s6] sm:$0xff] %v590
  %595 = vst [vmem:[%s6 + $0x8] sm:$0xff] %v591
  %596 = vst [vmem:[%s6 + $0x10] sm:$0xff] %v592
  %597 = vst [vmem:[%s6 + $0x18] sm:$0xff] %v593
  // Predicated region
  $region26: #{_lambda_.3} parent=0 // pred_check
    _
  $region27: #{_lambda_.3} parent=0 // pred_check_branch
    %599 = sbr.rel (0) target = $region29
  $region28: #{_lambda_.3} parent=0 // pred_region
    _
  $region29: #{_lambda_.3} parent=0 // pred_fallthru
    _
  // Predicated region
  $region30: #{_lambda_.3} parent=0 // pred_check
    _
  $region31: #{_lambda_.3} parent=0 // pred_check_branch
    %601 = sbr.rel (0) target = $region33
  $region32: #{_lambda_.3} parent=0 // pred_region
    _
  $region33: #{_lambda_.3} parent=0 // pred_fallthru
    _

</llo_original>
